<compile_context>
chip_gen: v5e
topology: v5e:2x2
jax: 0.10.0
libtpu: 0.0.40
codegen_flags: <defaults>
</compile_context>

<pallas_src>
import jax
import jax.numpy as jnp
from jax.experimental import pallas as pl
from jax.experimental.pallas import tpu as pltpu


def _round_up(x, m):
    return -(-x // m) * m


def _intermediate_kernel(x_ref, w_ref, b_ref, o_ref):
    # x_ref: (tm, H)  bf16 row tile of flattened hidden_states
    # w_ref: (H, tn)  bf16 column tile of dense.weight.T
    # b_ref: (1, tn)  f32 bias tile
    # o_ref: (tm, tn) output tile (input dtype)
    acc = jnp.dot(x_ref[...], w_ref[...], preferred_element_type=jnp.float32)
    o_ref[...] = jnp.maximum(acc + b_ref[...], 0.0).astype(o_ref.dtype)


def _choose_tiles(M, H, N, out_itemsize, tm_req):
    """Pick (tm, tn) so the double-buffered tile footprint fits a conservative
    VMEM budget (fits v7x's 64 MiB/core with headroom)."""
    tm = min(int(tm_req), _round_up(M, 8))
    tm = max(8, _round_up(tm, 8))

    def footprint(tm_, tn_):
        # 2x: default double-buffering of every pipelined operand.
        return 2 * (tm_ * H * 2          # x tile (bf16)
                    + H * tn_ * 2        # weight tile (bf16)
                    + tn_ * 4            # bias tile (f32)
                    + tm_ * tn_ * out_itemsize)  # output tile

    budget = 40 << 20
    tn = _round_up(N, 128)
    while tn > 128 and footprint(tm, tn) > budget:
        tn = _round_up(tn // 2, 128)
    while tm > 8 and footprint(tm, tn) > budget:
        tm = max(8, _round_up(tm // 2, 8))
    return tm, tn, footprint(tm, tn)


def intermediate_layer_forward(hidden_states, w_t, b, *, tm=256):
    """hidden_states: (..., H). w_t: (H, N) = dense.weight.T. b: (N,) or (1, N)."""
    orig_shape = hidden_states.shape
    H = orig_shape[-1]
    N = w_t.shape[1]
    out_dtype = hidden_states.dtype
    out_itemsize = jnp.dtype(out_dtype).itemsize

    # bf16 MXU operands (f32 accumulation happens in-kernel).  Callers that
    # already hold bf16 activations/weights pay nothing for these casts.
    x2d = hidden_states.reshape(-1, H).astype(jnp.bfloat16)
    w_bf16 = w_t.astype(jnp.bfloat16)
    b2d = jnp.asarray(b, jnp.float32).reshape(1, N)
    M = x2d.shape[0]

    tm_eff, tn_eff, fp_bytes = _choose_tiles(M, H, N, out_itemsize, tm)

    # Weight-tile outer, row-tile inner: each weight tile is DMA'd once and
    # stays resident across the inner row loop.
    grid = (pl.cdiv(N, tn_eff), pl.cdiv(M, tm_eff))

    cost = pl.CostEstimate(
        flops=2 * M * H * N,
        transcendentals=0,
        bytes_accessed=M * H * 2 + H * N * 2 + N * 4 + M * N * out_itemsize,
    )

    out = pl.pallas_call(
        _intermediate_kernel,
        out_shape=jax.ShapeDtypeStruct((M, N), out_dtype),
        grid_spec=pltpu.PrefetchScalarGridSpec(
            num_scalar_prefetch=0,
            grid=grid,
            in_specs=[
                pl.BlockSpec((tm_eff, H), lambda j, i: (i, 0)),   # x row tile
                pl.BlockSpec((H, tn_eff), lambda j, i: (0, j)),   # weight N tile
                pl.BlockSpec((1, tn_eff), lambda j, i: (0, j)),   # bias N tile
            ],
            out_specs=pl.BlockSpec((tm_eff, tn_eff), lambda j, i: (i, j)),
        ),
        compiler_params=pltpu.CompilerParams(
            dimension_semantics=("parallel", "parallel"),
            vmem_limit_bytes=int(max(fp_bytes + (8 << 20), 32 << 20)),
        ),
        cost_estimate=cost,
    )(x2d, w_bf16, b2d)

    return out.reshape(orig_shape[:-1] + (N,))


def _ref_forward(hidden_states, w_t, b):
    """Pure-JAX reference mirroring the PyTorch IntermediateLayer.forward."""
    return jax.nn.relu(hidden_states @ w_t + b)


def make_params(key, hidden_size, intermediate_size):
    # Mirror nn.Linear default init: U(-1/sqrt(fan_in), 1/sqrt(fan_in)).
    k_w, k_b = jax.random.split(key)
    scale = 1.0 / jnp.sqrt(hidden_size)
    w = jax.random.uniform(
        k_w, (intermediate_size, hidden_size), jnp.float32, -scale, scale
    )  # dense.weight, PyTorch layout (out, in)
    b = jax.random.uniform(
        k_b, (1, intermediate_size), jnp.float32, -scale, scale
    )  # dense.bias
    return {"w_t": w.T, "b": b}  # weight passed pre-transposed: (H, N)


if __name__ == "__main__":
    key = jax.random.PRNGKey(0)
    k_x, k_p = jax.random.split(key)

    B, T, HIDDEN, INTERMEDIATE = 2, 8, 32, 128
    hidden_states = jax.random.normal(k_x, (B, T, HIDDEN), jnp.float32)
    params = make_params(k_p, HIDDEN, INTERMEDIATE)

    out = intermediate_layer_forward(hidden_states, params["w_t"], params["b"])
    out = jax.block_until_ready(out)

    ref = jax.block_until_ready(_ref_forward(hidden_states, params["w_t"], params["b"]))
    assert out.shape == (B, T, INTERMEDIATE), out.shape
    # bf16 MXU operands (f32 accumulation): relax tolerance vs. the f32 reference.
    assert jnp.allclose(out, ref, atol=2e-2, rtol=2e-2), float(
        jnp.max(jnp.abs(out.astype(jnp.float32) - ref))
    )

    print("KERNEL_OK")
</pallas_src>

<mosaic_0001>
module attributes {stable_mosaic.version = 11 : i64} {
  func.func @_intermediate_kernel(%arg0: i32, %arg1: i32, %arg2: memref<16x32xbf16, #tpu.memory_space<vmem>>, %arg3: memref<32x128xbf16, #tpu.memory_space<vmem>>, %arg4: memref<1x128xf32, #tpu.memory_space<vmem>>, %arg5: memref<16x128xf32, #tpu.memory_space<vmem>>) attributes {dimension_semantics = [#tpu.dimension_semantics<parallel>, #tpu.dimension_semantics<parallel>], iteration_bounds = array<i64: 1, 1>, scalar_prefetch = 0 : i64, scratch_operands = 0 : i64, tpu.core_type = #tpu.core_type<tc>, window_params = [{transform_indices = @transform_0, window_bounds = array<i64: 16, 32>}, {transform_indices = @transform_1, window_bounds = array<i64: 32, 128>}, {transform_indices = @transform_2, window_bounds = array<i64: 1, 128>}, {transform_indices = @transform_3, window_bounds = array<i64: 16, 128>}]} {
    %c0 = arith.constant 0 : index
    %c0_0 = arith.constant 0 : index
    %0 = vector.load %arg2[%c0, %c0_0] : memref<16x32xbf16, #tpu.memory_space<vmem>>, vector<16x32xbf16>
    %c0_1 = arith.constant 0 : index
    %c0_2 = arith.constant 0 : index
    %1 = vector.load %arg3[%c0_1, %c0_2] : memref<32x128xbf16, #tpu.memory_space<vmem>>, vector<32x128xbf16>
    %cst = arith.constant dense<0.000000e+00> : vector<16x128xf32>
    %2 = tpu.matmul %0, %1, %cst {dimension_numbers = #tpu.dot_dimension_numbers<[1], [0], [0], [1], [0, 0, 1, 1], [], []>} : vector<16x32xbf16>, vector<32x128xbf16>, vector<16x128xf32> -> vector<16x128xf32>
    %c0_3 = arith.constant 0 : index
    %c0_4 = arith.constant 0 : index
    %3 = vector.load %arg4[%c0_3, %c0_4] : memref<1x128xf32, #tpu.memory_space<vmem>>, vector<1x128xf32>
    %4 = vector.broadcast %3 : vector<1x128xf32> to vector<16x128xf32>
    %5 = arith.addf %2, %4 : vector<16x128xf32>
    %cst_5 = arith.constant 0.000000e+00 : f32
    %6 = vector.broadcast %cst_5 : f32 to vector<16x128xf32>
    %7 = arith.maximumf %5, %6 : vector<16x128xf32>
    %c0_6 = arith.constant 0 : index
    %c0_7 = arith.constant 0 : index
    %8 = vector.load %arg5[%c0_6, %c0_7] : memref<16x128xf32, #tpu.memory_space<vmem>>, vector<16x128xf32>
    tpu.vector_store %arg5[%c0_6, %c0_7], %7 {strides = array<i32>} : memref<16x128xf32, #tpu.memory_space<vmem>>, vector<16x128xf32>,
    return
  }
  func.func @transform_0(%arg0: i32, %arg1: i32) -> (i32, i32) {
    %c0_i32 = arith.constant 0 : i32
    %c0_i32_0 = arith.constant 0 : i32
    return %arg1, %c0_i32 : i32, i32
  }
  func.func @transform_1(%arg0: i32, %arg1: i32) -> (i32, i32) {
    %c0_i32 = arith.constant 0 : i32
    %c0_i32_0 = arith.constant 0 : i32
    return %c0_i32, %arg0 : i32, i32
  }
  func.func @transform_2(%arg0: i32, %arg1: i32) -> (i32, i32) {
    %c0_i32 = arith.constant 0 : i32
    %c0_i32_0 = arith.constant 0 : i32
    return %c0_i32, %arg0 : i32, i32
  }
  func.func @transform_3(%arg0: i32, %arg1: i32) -> (i32, i32) {
    %c0_i32 = arith.constant 0 : i32
    return %arg1, %arg0 : i32, i32
  }
}

</mosaic_0001>

<llo_original>
// kernel: tpu_custom_call.1
$region0: #{tpu_custom_call.1}
  #allocation0 [shape = 'u32[]', space=smem, size = 0x4, offset = 0x4, fixed_abs, tag = 'smem constant byte address 0x4 - core index']
  #allocation1 [shape = 'u32[72,128]{1,0:T(1,128)}', space=vmem, size = 0x9000, scoped, tag = 'internal scratch']
  %s0 = inlined_call_operand.hbm [shape: bf16[16,32], index: 0, kind: input, shape index: {}]
  %s1 = inlined_call_operand.hbm [shape: bf16[32,128], index: 1, kind: input, shape index: {}]
  %s2 = inlined_call_operand.vmem [shape: f32[1,128], index: 2, kind: input, shape index: {}]
  %s3 = inlined_call_operand.hbm [shape: f32[16,128], index: 3, kind: output, shape index: {}]
  %s4 = sld [smem:[#allocation0]]
  $region30: #{tpu_custom_call.1} parent=0
    _
  %s6 = ssub.s32 1, %s4
  %s7 = scalar_select 0, %s6, %s4
  $region1: #{tpu_custom_call.1} parent=0
    #allocation2 [shape = 'u8[4096]{0}', space=vmem, size = 0x1000, scoped, tag = 'input window, operand 0, single buffered']
    #allocation3 [shape = 's32[1]{0}', space=sflag, size = 0x4, scoped, tag = 'scoped memory for tpu_custom_call.1']
    #allocation4 [shape = 's32[1]{0}', space=sflag, size = 0x4, scoped, tag = 'scoped memory for tpu_custom_call.1']
    #allocation5 [shape = 'u8[8192]{0}', space=vmem, size = 0x2000, scoped, tag = 'input window, operand 1, single buffered']
    #allocation6 [shape = 's32[1]{0}', space=sflag, size = 0x4, scoped, tag = 'scoped memory for tpu_custom_call.1']
    #allocation7 [shape = 'u8[8192]{0}', space=vmem, size = 0x2000, scoped, tag = 'output window, operand 0, single buffered']
    %8 = vsyncpa [#allocation3], 0
    %9 = vsyncpa [#allocation6], 0
    %10 = vsyncpa [#allocation4], 0
    // Predicated region
    $region2: #{tpu_custom_call.1} parent=1 // pred_check
      _
    $region3: #{tpu_custom_call.1} parent=1 // pred_check_branch
      %12 = sbr.rel (0) target = $region5
    $region4: #{tpu_custom_call.1} parent=1 // pred_region
      %14 = vsyncadd [#allocation3], 0
      %s15 = sshll.u32 %s0, 4
      %s16 = int_to_ptr.hbm [resolvable:$true] %s15
      %s17 = sshll.u32 [#allocation2], 4
      %s18 = int_to_ptr.vmem [resolvable:$true] %s17
      %23 = dma.hbm_to_vmem [thread:$0]  %s16, 128, %s18, [#allocation3], 64, 64, 4
    $region5: #{tpu_custom_call.1} parent=1 // pred_fallthru
      _
    // Predicated region
    $region6: #{tpu_custom_call.1} parent=1 // pred_check
      _
    $region7: #{tpu_custom_call.1} parent=1 // pred_check_branch
      %25 = sbr.rel (0) target = $region9
    $region8: #{tpu_custom_call.1} parent=1 // pred_region
      %27 = vsyncadd [#allocation6], 0
      %s28 = sshll.u32 %s1, 4
      %s29 = int_to_ptr.hbm [resolvable:$true] %s28
      %s30 = sshll.u32 [#allocation5], 4
      %s31 = int_to_ptr.vmem [resolvable:$true] %s30
      %36 = dma.hbm_to_vmem [thread:$0]  %s29, 256, %s31, [#allocation6], 64, 64, 4
    $region9: #{tpu_custom_call.1} parent=1 // pred_fallthru
      _
    // Predicated region
    $region10: #{tpu_custom_call.1} parent=1 // pred_check
      _
    $region11: #{tpu_custom_call.1} parent=1 // pred_check_branch
      %38 = sbr.rel (0) target = $region13
    $region12: #{tpu_custom_call.1} parent=1 // pred_region
      _
    $region13: #{tpu_custom_call.1} parent=1 // pred_fallthru
      _
    // Predicated region
    $region14: #{tpu_custom_call.1} parent=1 // pred_check
      _
    $region15: #{tpu_custom_call.1} parent=1 // pred_check_branch
      %40 = sbr.rel (0) target = $region17
    $region16: #{tpu_custom_call.1} parent=1 // pred_region
      %42 = dma.done [#allocation3], 128
    $region17: #{tpu_custom_call.1} parent=1 // pred_fallthru
      _
    // Predicated region
    $region18: #{tpu_custom_call.1} parent=1 // pred_check
      _
    $region19: #{tpu_custom_call.1} parent=1 // pred_check_branch
      %44 = sbr.rel (0) target = $region21
    $region20: #{tpu_custom_call.1} parent=1 // pred_region
      %46 = dma.done [#allocation6], 256
    $region21: #{tpu_custom_call.1} parent=1 // pred_fallthru
      _
    %v48 = vld [vmem:[#allocation2] sm:$0xf]
    %v49 = vld [vmem:[#allocation2 + $0x4] sm:$0xf]
    %v50 = vld [vmem:[#allocation5] sm:$0xf]
    %v51 = vld [vmem:[#allocation5 + $0x4] sm:$0xf]
    %v52 = vld [vmem:[#allocation5 + $0x8] sm:$0xf]
    %v53 = vld [vmem:[#allocation5 + $0xc] sm:$0xf]
    %v54 = vld [vmem:[%s2] sm:$0x1]
    %v56 = vperm.slane %v54, 0
    %v60 = vunpack.c.l.b16 %v48
    %v61 = vunpack.c.l.b16 %v49
    %v62 = vpack.c.b16 %v61, %v60
    %v67 = vunpack.c.l.b16 %v50
    %v68 = vunpack.c.l.b16 %v51
    %v69 = vunpack.c.l.b16 %v52
    %v70 = vunpack.c.l.b16 %v53
    %v71 = vpack.c.b16 %v68, %v67
    %v72 = vpack.c.b16 %v70, %v69
    %vm75 = vcmask 261120
    %v77 = vsel %vm75, %v62, 0
    %79 = vmatpush.bf16.msra.mxu0 0
    %80 = vmatpush.bf16.msra.mxu0 0
    %81 = vmatpush.bf16.msra.mxu0 0
    %82 = vmatpush.bf16.msra.mxu0 0
    %83 = vmatpush.bf16.msra.mxu0 0
    %84 = vmatpush.bf16.msra.mxu0 0
    %85 = vmatpush.bf16.msra.mxu0 %v72
    %86 = vmatpush.bf16.msra.mxu0 %v71
    %87 = vmatmul.bf16.gmra.mxu0 %v77
    %v88 = vpop.f32.mrf.mxu0
    %v89 = vadd.f32 %v56, %v88
    %v90 = vpop.f32.mrf.mxu0
    %v91 = vadd.f32 %v56, %v90
    %92 = vdwg.mxu0
    %v93 = vmax.f32 %v89, 0.0
    %v94 = vmax.f32 %v91, 0.0
    %95 = vst [vmem:[#allocation7] sm:$0xff] %v93
    %96 = vst [vmem:[#allocation7 + $0x8] sm:$0xff] %v94
    // Predicated region
    $region22: #{tpu_custom_call.1} parent=1 // pred_check
      _
    $region23: #{tpu_custom_call.1} parent=1 // pred_check_branch
      %98 = sbr.rel (0) target = $region25
    $region24: #{tpu_custom_call.1} parent=1 // pred_region
      %100 = vsyncadd [#allocation4], 0
      %s101 = sshll.u32 [#allocation7], 4
      %s102 = int_to_ptr.vmem [resolvable:$true] %s101
      %s103 = sshll.u32 %s3, 4
      %s104 = int_to_ptr.hbm [resolvable:$true] %s103
      %109 = dma.vmem_to_hbm [thread:$0]  %s102, 256, %s104, [#allocation4], 128, 128, 8
    $region25: #{tpu_custom_call.1} parent=1 // pred_fallthru
      _
    // Predicated region
    $region26: #{tpu_custom_call.1} parent=1 // pred_check
      _
    $region27: #{tpu_custom_call.1} parent=1 // pred_check_branch
      %111 = sbr.rel (0) target = $region29
    $region28: #{tpu_custom_call.1} parent=1 // pred_region
      %113 = dma.done [#allocation4], 256
    $region29: #{tpu_custom_call.1} parent=1 // pred_fallthru
      _
    %114 = vsyncpa [#allocation3], 1
    %115 = vsyncpa [#allocation6], 1
    %116 = vsyncpa [#allocation4], 1

</llo_original>
